<compile_context>
chip_gen: v7x
topology: tpu7x:2x2x1
jax: 0.10.0
libtpu: 0.0.40
codegen_flags: <defaults>
</compile_context>

<pallas_src>
import functools

import jax
import jax.numpy as jnp
from jax.experimental import pallas as pl
from jax.experimental.pallas import tpu as pltpu

_INV_SQRT2 = 0.7071067811865476
_LANE = 128


# ------------------------------ Pallas kernel -------------------------------

def _fused_model_kernel(x_ref, w1_ref, w2_ref, o_ref):
    """Whole forward in one gridless kernel: (conv+bias) -> GELU -> (fc+bias).

    x_ref : (B, C*T)      bf16  flattened input, column index c*T + t
    w1_ref: (C*T+1, H*L)  bf16  conv-as-matmul weight; column index h*L + l
                                (== torch's channel-major flatten index);
                                last row = conv bias broadcast over l
    w2_ref: (H*L+1, CP)   bf16  fc weight transposed, lane-padded to CP=128;
                                last row = fc bias
    o_ref : (B, CP)       f32   lane-dense logits (valid classes in [:, :classes])
    """
    k1 = x_ref.shape[1]           # C*T
    k2 = w2_ref.shape[0] - 1      # H*L

    # Stage 1: conv (with its zero padding / stride / bias) as ONE MXU matmul.
    h = jnp.dot(x_ref[...], w1_ref[0:k1, :], preferred_element_type=jnp.float32)
    h = h + w1_ref[k1:k1 + 1, :].astype(jnp.float32)          # conv bias row

    # Exact-erf GELU in f32 over the whole (B, H*L) block (single EUP/VALU pass).
    g = 0.5 * h * (1.0 + jax.lax.erf(h * _INV_SQRT2))

    # Stage 2: fc as ONE MXU matmul with K = H*L = 256; bf16 in, f32 accumulate.
    out = jnp.dot(g.astype(jnp.bfloat16), w2_ref[0:k2, :],
                  preferred_element_type=jnp.float32)
    o_ref[...] = out + w2_ref[k2:k2 + 1, :].astype(jnp.float32)   # fc bias row


# --------------------------- one-time weight packing -------------------------

def pack_params(conv_w, conv_b, fc_w, fc_b, *, T, stride=2, pad=1):
    """Hoisted out of the per-call path; run once, reuse the packed weights.

    Folds:
      * im2col + Conv1d (zero padding, stride)  -> dense W1[c*T+t, h*L+l]
      * conv bias                               -> extra (last) row of W1
      * torch channel-major flatten + fc weight -> W2 = fc_w.T, lane-padded
      * fc bias                                 -> extra (last) row of W2
    """
    H, C, k = conv_w.shape
    classes = fc_w.shape[0]
    L = (T + 2 * pad - k) // stride + 1
    assert fc_w.shape[1] == H * L, (fc_w.shape, H, L)

    # Column (h*L + l) of W1 = response of conv output (h, l) to one-hot inputs
    # (conv is linear in x; padding contributes zero and is baked in).
    eye = jnp.eye(C * T, dtype=jnp.float32).reshape(C * T, C, T)
    w1_body = jax.lax.conv_general_dilated(
        eye, conv_w, window_strides=(stride,), padding=[(pad, pad)],
        dimension_numbers=("NCH", "OIH", "NCH")).reshape(C * T, H * L)
    w1_bias = jnp.tile(conv_b[:, None], (1, L)).reshape(1, H * L)  # col h*L+l -> conv_b[h]
    w1 = jnp.concatenate([w1_body, w1_bias], axis=0)               # (C*T+1, H*L)

    CP = -(-classes // _LANE) * _LANE                              # lane-dense output
    w2 = jnp.zeros((H * L + 1, CP), jnp.float32)
    w2 = w2.at[:H * L, :classes].set(fc_w.T)
    w2 = w2.at[H * L, :classes].set(fc_b)

    return w1.astype(jnp.bfloat16), w2.astype(jnp.bfloat16)


# ------------------------------- forward (jitted) ----------------------------

@functools.partial(jax.jit, static_argnames=("classes",))
def model_forward(x, w1, w2, *, classes):
    B, C, T = x.shape
    xf = x.reshape(B, C * T).astype(jnp.bfloat16)        # only per-call prep
    CP = w2.shape[1]
    vmem = lambda: pl.BlockSpec(memory_space=pltpu.MemorySpace.VMEM)
    # TODO(synk): at real BENDR sizes, grid over the H*L reduction axis
    # ("arbitrary") with an f32 accumulator scratch + vmem_limit_bytes, and a
    # "parallel" batch axis; gridless full-VMEM blocks are only for toy shapes.
    logits = pl.pallas_call(
        _fused_model_kernel,
        in_specs=[vmem(), vmem(), vmem()],
        out_specs=vmem(),
        out_shape=jax.ShapeDtypeStruct((B, CP), jnp.float32),
    )(xf, w1, w2)
    return logits[:, :classes]


# ------------------------------ reference / init -----------------------------

def _reference_jax(x, conv_w, conv_b, fc_w, fc_b, *, stride, pad):
    """Pure-XLA f32 mirror of the PyTorch forward (layout / numerics check)."""
    conv = jax.lax.conv_general_dilated(
        x, conv_w, window_strides=(stride,), padding=[(pad, pad)],
        dimension_numbers=("NCH", "OIH", "NCH"))
    conv = conv + conv_b[None, :, None]                   # (B, H, L)
    g = 0.5 * conv * (1.0 + jax.lax.erf(conv * _INV_SQRT2))
    feat = g.reshape(x.shape[0], -1)                      # channel-major, like torch
    return feat @ fc_w.T + fc_b


def init_params(key, C, H, k, final_length, classes):
    k_cw, k_cb, k_fw, k_fb = jax.random.split(key, 4)
    conv_w = jax.random.normal(k_cw, (H, C, k), jnp.float32) * 0.1   # torch (H, C, k)
    conv_b = jax.random.normal(k_cb, (H,), jnp.float32) * 0.1
    fc_w = jax.random.normal(k_fw, (classes, final_length), jnp.float32) * 0.05
    fc_b = jax.random.normal(k_fb, (classes,), jnp.float32) * 0.05
    return conv_w, conv_b, fc_w, fc_b


if __name__ == "__main__":
    B, C, T = 2, 4, 16
    H, k, stride, pad = 32, 3, 2, 1
    L = (T + 2 * pad - k) // stride + 1                   # 8
    final_length = H * L                                  # 256 (backbone.final_length)
    classes = 5

    key = jax.random.PRNGKey(0)
    k_x, k_p = jax.random.split(key)
    x = jax.random.normal(k_x, (B, C, T), jnp.float32)
    conv_w, conv_b, fc_w, fc_b = init_params(k_p, C, H, k, final_length, classes)

    # One-time weight packing, kept out of the per-call jit path.
    w1, w2 = pack_params(conv_w, conv_b, fc_w, fc_b, T=T, stride=stride, pad=pad)
    w1 = jax.device_put(w1)
    w2 = jax.device_put(w2)

    out = jax.block_until_ready(model_forward(x, w1, w2, classes=classes))
    assert out.shape == (B, classes), out.shape

    # Numerics / layout check against a pure-XLA f32 reference (bf16 operands
    # in the kernel -> ~1e-3 expected error, well inside 2e-2).
    ref = jax.block_until_ready(
        _reference_jax(x, conv_w, conv_b, fc_w, fc_b, stride=stride, pad=pad))
    assert jnp.allclose(out, ref, atol=2e-2, rtol=2e-2), (
        float(jnp.max(jnp.abs(out - ref))))

    print("KERNEL_OK")
</pallas_src>

<mosaic_0001>
module attributes {stable_mosaic.version = 11 : i64} {
  func.func @_fused_model_kernel(%arg0: memref<2x64xbf16, #tpu.memory_space<vmem>>, %arg1: memref<65x256xbf16, #tpu.memory_space<vmem>>, %arg2: memref<257x128xbf16, #tpu.memory_space<vmem>>, %arg3: memref<2x128xf32, #tpu.memory_space<vmem>>) attributes {dimension_semantics = [], scalar_prefetch = 0 : i64, scratch_operands = 0 : i64, tpu.core_type = #tpu.core_type<tc>} {
    %c0 = arith.constant 0 : index
    %c0_0 = arith.constant 0 : index
    %0 = vector.load %arg0[%c0, %c0_0] : memref<2x64xbf16, #tpu.memory_space<vmem>>, vector<2x64xbf16>
    %c0_1 = arith.constant 0 : index
    %c0_2 = arith.constant 0 : index
    %1 = vector.load %arg1[%c0_1, %c0_2] : memref<65x256xbf16, #tpu.memory_space<vmem>>, vector<64x256xbf16>
    %cst = arith.constant dense<0.000000e+00> : vector<2x256xf32>
    %2 = tpu.matmul %0, %1, %cst {dimension_numbers = #tpu.dot_dimension_numbers<[1], [0], [0], [1], [0, 0, 1, 1], [], []>} : vector<2x64xbf16>, vector<64x256xbf16>, vector<2x256xf32> -> vector<2x256xf32>
    %c64 = arith.constant 64 : index
    %c0_3 = arith.constant 0 : index
    %3 = vector.load %arg1[%c64, %c0_3] : memref<65x256xbf16, #tpu.memory_space<vmem>>, vector<1x256xbf16>
    %4 = arith.extf %3 : vector<1x256xbf16> to vector<1x256xf32>
    %5 = vector.broadcast %4 : vector<1x256xf32> to vector<2x256xf32>
    %6 = arith.addf %2, %5 : vector<2x256xf32>
    %cst_4 = arith.constant 5.000000e-01 : f32
    %7 = vector.broadcast %cst_4 : f32 to vector<2x256xf32>
    %8 = arith.mulf %7, %6 : vector<2x256xf32>
    %cst_5 = arith.constant 0.707106769 : f32
    %9 = vector.broadcast %cst_5 : f32 to vector<2x256xf32>
    %10 = arith.mulf %6, %9 : vector<2x256xf32>
    %11 = math.erf %10 : vector<2x256xf32>
    %cst_6 = arith.constant 1.000000e+00 : f32
    %12 = vector.broadcast %cst_6 : f32 to vector<2x256xf32>
    %13 = arith.addf %12, %11 : vector<2x256xf32>
    %14 = arith.mulf %8, %13 : vector<2x256xf32>
    %15 = arith.truncf %14 : vector<2x256xf32> to vector<2x256xbf16>
    %c0_7 = arith.constant 0 : index
    %c0_8 = arith.constant 0 : index
    %16 = vector.load %arg2[%c0_7, %c0_8] : memref<257x128xbf16, #tpu.memory_space<vmem>>, vector<256x128xbf16>
    %cst_9 = arith.constant dense<0.000000e+00> : vector<2x128xf32>
    %17 = tpu.matmul %15, %16, %cst_9 {dimension_numbers = #tpu.dot_dimension_numbers<[1], [0], [0], [1], [0, 0, 1, 1], [], []>} : vector<2x256xbf16>, vector<256x128xbf16>, vector<2x128xf32> -> vector<2x128xf32>
    %c256 = arith.constant 256 : index
    %c0_10 = arith.constant 0 : index
    %18 = vector.load %arg2[%c256, %c0_10] : memref<257x128xbf16, #tpu.memory_space<vmem>>, vector<1x128xbf16>
    %19 = arith.extf %18 : vector<1x128xbf16> to vector<1x128xf32>
    %20 = vector.broadcast %19 : vector<1x128xf32> to vector<2x128xf32>
    %21 = arith.addf %17, %20 : vector<2x128xf32>
    %c0_11 = arith.constant 0 : index
    %c0_12 = arith.constant 0 : index
    %22 = vector.load %arg3[%c0_11, %c0_12] : memref<2x128xf32, #tpu.memory_space<vmem>>, vector<2x128xf32>
    tpu.vector_store %arg3[%c0_11, %c0_12], %21 {strides = array<i32>} : memref<2x128xf32, #tpu.memory_space<vmem>>, vector<2x128xf32>,
    return
  }
}

</mosaic_0001>

<llo_original>
// kernel: model_forward.1
$region0: #{model_forward.1}
  #allocation0 [shape = 'u32[]', space=smem, size = 0x4, offset = 0x4, fixed_abs, tag = 'smem constant byte address 0x4 - core index']
  #allocation1 [shape = 'u32[144,128]{1,0:T(1,128)}', space=vmem, size = 0x12000, scoped, tag = 'internal scratch']
  %s0 = inlined_call_operand.vmem [shape: bf16[2,64], index: 0, kind: input, shape index: {}]
  %s1 = inlined_call_operand.hbm [shape: bf16[65,256], index: 1, kind: input, shape index: {}]
  %s2 = inlined_call_operand.hbm [shape: bf16[257,128], index: 2, kind: input, shape index: {}]
  %s3 = inlined_call_operand.hbm [shape: f32[2,128], index: 3, kind: output, shape index: {}]
  %s4 = sld [smem:[#allocation0]]
  $region30: #{model_forward.1} parent=0
    _
  %s6 = ssub.s32 1, %s4
  %s7 = scalar_select 0, %s6, %s4
  $region1: #{model_forward.1} parent=0
    #allocation2 [shape = 'u8[36864]{0}', space=vmem, size = 0x9000, scoped, tag = 'input window, operand 1, single buffered']
    #allocation3 [shape = 's32[1]{0}', space=sflag, size = 0x4, scoped, tag = 'scoped memory for model_forward.1']
    #allocation4 [shape = 's32[1]{0}', space=sflag, size = 0x4, scoped, tag = 'scoped memory for model_forward.1']
    #allocation5 [shape = 'u8[67584]{0}', space=vmem, size = 0x10800, scoped, tag = 'input window, operand 2, single buffered']
    #allocation6 [shape = 's32[1]{0}', space=sflag, size = 0x4, scoped, tag = 'scoped memory for model_forward.1']
    #allocation7 [shape = 'u8[1024]{0}', space=vmem, size = 0x400, scoped, tag = 'output window, operand 0, single buffered']
    %8 = vsyncpa [#allocation3], 0
    %9 = vsyncpa [#allocation6], 0
    %10 = vsyncpa [#allocation4], 0
    // Predicated region
    $region2: #{model_forward.1} parent=1 // pred_check
      _
    $region3: #{model_forward.1} parent=1 // pred_check_branch
      %12 = sbr.rel (0) target = $region5
    $region4: #{model_forward.1} parent=1 // pred_region
      _
    $region5: #{model_forward.1} parent=1 // pred_fallthru
      _
    // Predicated region
    $region6: #{model_forward.1} parent=1 // pred_check
      _
    $region7: #{model_forward.1} parent=1 // pred_check_branch
      %14 = sbr.rel (0) target = $region9
    $region8: #{model_forward.1} parent=1 // pred_region
      %s16 = ssub.s32 1152, 1152
      %17 = vsyncadd [#allocation3], %s16
      %s18 = sshll.u32 [#allocation2], 4
      %s19 = int_to_ptr.vmem [resolvable:$true] %s18
      %24 = dma.hbm_to_vmem [thread:$0]  %s1, 1152, %s19, [#allocation3], 128, 128, 8
    $region9: #{model_forward.1} parent=1 // pred_fallthru
      _
    // Predicated region
    $region10: #{model_forward.1} parent=1 // pred_check
      _
    $region11: #{model_forward.1} parent=1 // pred_check_branch
      %26 = sbr.rel (0) target = $region13
    $region12: #{model_forward.1} parent=1 // pred_region
      %s28 = ssub.s32 2112, 2112
      %29 = vsyncadd [#allocation6], %s28
      %s30 = sshll.u32 [#allocation5], 4
      %s31 = int_to_ptr.vmem [resolvable:$true] %s30
      %36 = dma.hbm_to_vmem [thread:$0]  %s2, 2112, %s31, [#allocation6], 64, 64, 4
    $region13: #{model_forward.1} parent=1 // pred_fallthru
      _
    // Predicated region
    $region14: #{model_forward.1} parent=1 // pred_check
      _
    $region15: #{model_forward.1} parent=1 // pred_check_branch
      %38 = sbr.rel (0) target = $region17
    $region16: #{model_forward.1} parent=1 // pred_region
      %39 = dma.done [#allocation3], 1152
    $region17: #{model_forward.1} parent=1 // pred_fallthru
      _
    // Predicated region
    $region18: #{model_forward.1} parent=1 // pred_check
      _
    $region19: #{model_forward.1} parent=1 // pred_check_branch
      %41 = sbr.rel (0) target = $region21
    $region20: #{model_forward.1} parent=1 // pred_region
      %42 = dma.done [#allocation6], 2112
    $region21: #{model_forward.1} parent=1 // pred_fallthru
      _
    %v44 = vld [vmem:[%s0] sm:$0x1]
    %v45 = vld [vmem:[#allocation2] sm:$0xff]
    %v46 = vld [vmem:[#allocation2 + $0x8] sm:$0xff]
    %v47 = vld [vmem:[#allocation2 + $0x10] sm:$0xff]
    %v48 = vld [vmem:[#allocation2 + $0x18] sm:$0xff]
    %v49 = vld [vmem:[#allocation2 + $0x20] sm:$0xff]
    %v50 = vld [vmem:[#allocation2 + $0x28] sm:$0xff]
    %v51 = vld [vmem:[#allocation2 + $0x30] sm:$0xff]
    %v52 = vld [vmem:[#allocation2 + $0x38] sm:$0xff]
    %v53 = vld [vmem:[#allocation2 + $0x40] sm:$0x11]
    %v54 = vunpack.c.l.bf16 %v53
    %v55 = vunpack.c.h.bf16 %v53
    %v56 = vlaneseq
    %v57 = vshrl.u32 %v56, 7
    %v58 = vsub.s32 0, %v57
    %v59 = vrot.slane %v54, %v58
    %v60 = vlaneseq
    %v61 = vshrl.u32 %v60, 7
    %v62 = vsub.s32 0, %v61
    %v63 = vrot.slane %v55, %v62
    %v72 = vunpack.c.l.b16 %v45
    %v73 = vunpack.c.h.b16 %v45
    %v74 = vunpack.c.l.b16 %v46
    %v75 = vunpack.c.h.b16 %v46
    %v76 = vunpack.c.l.b16 %v47
    %v77 = vunpack.c.h.b16 %v47
    %v78 = vunpack.c.l.b16 %v48
    %v79 = vunpack.c.h.b16 %v48
    %v80 = vunpack.c.l.b16 %v49
    %v81 = vunpack.c.h.b16 %v49
    %v82 = vunpack.c.l.b16 %v50
    %v83 = vunpack.c.h.b16 %v50
    %v84 = vunpack.c.l.b16 %v51
    %v85 = vunpack.c.h.b16 %v51
    %v86 = vunpack.c.l.b16 %v52
    %v87 = vunpack.c.h.b16 %v52
    %v88 = vpack.c.b16 %v74, %v72
    %v89 = vpack.c.b16 %v75, %v73
    %v90 = vpack.c.b16 %v78, %v76
    %v91 = vpack.c.b16 %v79, %v77
    %v92 = vpack.c.b16 %v82, %v80
    %v93 = vpack.c.b16 %v83, %v81
    %v94 = vpack.c.b16 %v86, %v84
    %v95 = vpack.c.b16 %v87, %v85
    %vm104 = vcmask 523264
    %v106 = vsel %vm104, %v44, 0
    %108 = vmatprep.subr.bf16.mxu0 %v89
    %109 = vmatpush1.bf16.msra.mxu0 %v88
    %110 = vmatprep.subr.bf16.mxu0 %v91
    %111 = vmatpush1.bf16.msra.mxu0 %v90
    %112 = vmatprep.subr.bf16.mxu0 %v93
    %113 = vmatpush1.bf16.msra.mxu0 %v92
    %114 = vmatprep.subr.bf16.mxu0 %v95
    %115 = vmatpush1.bf16.msra.mxu0 %v94
    %116 = vmatprep.subr.bf16.mxu0 0
    %117 = vmatpush1.bf16.msra.mxu0 0
    %118 = vmatprep.subr.bf16.mxu0 0
    %119 = vmatpush1.bf16.msra.mxu0 0
    %120 = vmatprep.subr.bf16.mxu0 0
    %121 = vmatpush1.bf16.msra.mxu0 0
    %122 = vmatprep.subr.bf16.mxu0 0
    %123 = vmatpush1.bf16.msra.mxu0 0
    %124 = vmatprep.subr.bf16.mxu0 0
    %125 = vmatpush1.bf16.msra.mxu0 0
    %126 = vmatprep.subr.bf16.mxu0 0
    %127 = vmatpush1.bf16.msra.mxu0 0
    %128 = vmatprep.subr.bf16.mxu0 0
    %129 = vmatpush1.bf16.msra.mxu0 0
    %130 = vmatprep.subr.bf16.mxu0 0
    %131 = vmatpush1.bf16.msra.mxu0 0
    %132 = vmatprep.subr.bf16.mxu0 0
    %133 = vmatpush1.bf16.msra.mxu0 0
    %134 = vmatprep.subr.bf16.mxu0 0
    %135 = vmatpush1.bf16.msra.mxu0 0
    %136 = vmatprep.subr.bf16.mxu0 0
    %137 = vmatpush1.bf16.msra.mxu0 0
    %138 = vmatprep.subr.bf16.mxu0 0
    %139 = vmatpush1.bf16.msra.mxu0 0
    %140 = vmatprep.mubr.bf16.mxu0 0
    %141 = vmatmul.mubr.bf16.gmra.mrb[0].mxu0 %v106
    %v142 = vpop.f32.mrb[0].mxu0
    %v143 = vadd.f32 %v59, %v142
    %v144 = vpop.f32.mrb[0].mxu0
    %v145 = vadd.f32 %v63, %v144
    %v146 = vpop.f32.mrb[0].mxu0
    %v147 = vpop.f32.mrb[0].mxu0
    %148 = vdwg.mxu0
    %v149 = vmul.f32 %v143, 0.5
    %v150 = vmul.f32 %v145, 0.5
    %v151 = vmul.f32 %v143, 0.70710677
    %v152 = vmul.f32 %v145, 0.70710677
    %v153 = verf.f32.pop %v151
    %v154 = verf.f32.pop %v152
    %v155 = vadd.f32 %v153, 1.0
    %v156 = vadd.f32 %v154, 1.0
    %v157 = vmul.f32 %v149, %v155
    %v158 = vmul.f32 %v150, %v156
    %v159 = vpack.c.bf16 %v157, %v157
    %v160 = vpack.c.bf16 %v158, %v158
    %v161 = vld [vmem:[#allocation5] sm:$0xf]
    %v162 = vld [vmem:[#allocation5 + $0x4] sm:$0xf]
    %v163 = vld [vmem:[#allocation5 + $0x8] sm:$0xf]
    %v164 = vld [vmem:[#allocation5 + $0xc] sm:$0xf]
    %v165 = vld [vmem:[#allocation5 + $0x10] sm:$0xf]
    %v166 = vld [vmem:[#allocation5 + $0x14] sm:$0xf]
    %v167 = vld [vmem:[#allocation5 + $0x18] sm:$0xf]
    %v168 = vld [vmem:[#allocation5 + $0x1c] sm:$0xf]
    %v169 = vld [vmem:[#allocation5 + $0x20] sm:$0xf]
    %v170 = vld [vmem:[#allocation5 + $0x24] sm:$0xf]
    %v171 = vld [vmem:[#allocation5 + $0x28] sm:$0xf]
    %v172 = vld [vmem:[#allocation5 + $0x2c] sm:$0xf]
    %v173 = vld [vmem:[#allocation5 + $0x30] sm:$0xf]
    %v174 = vld [vmem:[#allocation5 + $0x34] sm:$0xf]
    %v175 = vld [vmem:[#allocation5 + $0x38] sm:$0xf]
    %v176 = vld [vmem:[#allocation5 + $0x3c] sm:$0xf]
    %v177 = vld [vmem:[#allocation5 + $0x40] sm:$0xf]
    %v178 = vld [vmem:[#allocation5 + $0x44] sm:$0xf]
    %v179 = vld [vmem:[#allocation5 + $0x48] sm:$0xf]
    %v180 = vld [vmem:[#allocation5 + $0x4c] sm:$0xf]
    %v181 = vld [vmem:[#allocation5 + $0x50] sm:$0xf]
    %v182 = vld [vmem:[#allocation5 + $0x54] sm:$0xf]
    %v183 = vld [vmem:[#allocation5 + $0x58] sm:$0xf]
    %v184 = vld [vmem:[#allocation5 + $0x5c] sm:$0xf]
    %v185 = vld [vmem:[#allocation5 + $0x60] sm:$0xf]
    %v186 = vld [vmem:[#allocation5 + $0x64] sm:$0xf]
    %v187 = vld [vmem:[#allocation5 + $0x68] sm:$0xf]
    %v188 = vld [vmem:[#allocation5 + $0x6c] sm:$0xf]
    %v189 = vld [vmem:[#allocation5 + $0x70] sm:$0xf]
    %v190 = vld [vmem:[#allocation5 + $0x74] sm:$0xf]
    %v191 = vld [vmem:[#allocation5 + $0x78] sm:$0xf]
    %v192 = vld [vmem:[#allocation5 + $0x7c] sm:$0xf]
    %v193 = vld [vmem:[#allocation5 + $0x80] sm:$0x1]
    %v194 = vunpack.c.l.bf16 %v193
    %v195 = vlaneseq
    %v196 = vshrl.u32 %v195, 7
    %v197 = vsub.s32 0, %v196
    %v198 = vrot.slane %v194, %v197
    %v231 = vunpack.c.l.b16 %v161
    %v232 = vunpack.c.l.b16 %v162
    %v233 = vunpack.c.l.b16 %v163
    %v234 = vunpack.c.l.b16 %v164
    %v235 = vunpack.c.l.b16 %v165
    %v236 = vunpack.c.l.b16 %v166
    %v237 = vunpack.c.l.b16 %v167
    %v238 = vunpack.c.l.b16 %v168
    %v239 = vunpack.c.l.b16 %v169
    %v240 = vunpack.c.l.b16 %v170
    %v241 = vunpack.c.l.b16 %v171
    %v242 = vunpack.c.l.b16 %v172
    %v243 = vunpack.c.l.b16 %v173
    %v244 = vunpack.c.l.b16 %v174
    %v245 = vunpack.c.l.b16 %v175
    %v246 = vunpack.c.l.b16 %v176
    %v247 = vunpack.c.l.b16 %v177
    %v248 = vunpack.c.l.b16 %v178
    %v249 = vunpack.c.l.b16 %v179
    %v250 = vunpack.c.l.b16 %v180
    %v251 = vunpack.c.l.b16 %v181
    %v252 = vunpack.c.l.b16 %v182
    %v253 = vunpack.c.l.b16 %v183
    %v254 = vunpack.c.l.b16 %v184
    %v255 = vunpack.c.l.b16 %v185
    %v256 = vunpack.c.l.b16 %v186
    %v257 = vunpack.c.l.b16 %v187
    %v258 = vunpack.c.l.b16 %v188
    %v259 = vunpack.c.l.b16 %v189
    %v260 = vunpack.c.l.b16 %v190
    %v261 = vunpack.c.l.b16 %v191
    %v262 = vunpack.c.l.b16 %v192
    %v263 = vpack.c.b16 %v232, %v231
    %v264 = vpack.c.b16 %v234, %v233
    %v265 = vpack.c.b16 %v236, %v235
    %v266 = vpack.c.b16 %v238, %v237
    %v267 = vpack.c.b16 %v240, %v239
    %v268 = vpack.c.b16 %v242, %v241
    %v269 = vpack.c.b16 %v244, %v243
    %v270 = vpack.c.b16 %v246, %v245
    %v271 = vpack.c.b16 %v248, %v247
    %v272 = vpack.c.b16 %v250, %v249
    %v273 = vpack.c.b16 %v252, %v251
    %v274 = vpack.c.b16 %v254, %v253
    %v275 = vpack.c.b16 %v256, %v255
    %v276 = vpack.c.b16 %v258, %v257
    %v277 = vpack.c.b16 %v260, %v259
    %v278 = vpack.c.b16 %v262, %v261
    %295 = vmatprep.subr.bf16.mxu0 0
    %296 = vmatpush1.bf16.msra.mxu0 %v263
    %297 = vmatprep.subr.bf16.mxu0 0
    %298 = vmatpush1.bf16.msra.mxu0 %v264
    %299 = vmatprep.subr.bf16.mxu0 0
    %300 = vmatpush1.bf16.msra.mxu0 %v265
    %301 = vmatprep.subr.bf16.mxu0 0
    %302 = vmatpush1.bf16.msra.mxu0 %v266
    %303 = vmatprep.subr.bf16.mxu0 0
    %304 = vmatpush1.bf16.msra.mxu0 %v267
    %305 = vmatprep.subr.bf16.mxu0 0
    %306 = vmatpush1.bf16.msra.mxu0 %v268
    %307 = vmatprep.subr.bf16.mxu0 0
    %308 = vmatpush1.bf16.msra.mxu0 %v269
    %309 = vmatprep.subr.bf16.mxu0 0
    %310 = vmatpush1.bf16.msra.mxu0 %v270
    %311 = vmatprep.subr.bf16.mxu0 0
    %312 = vmatpush1.bf16.msra.mxu0 %v271
    %313 = vmatprep.subr.bf16.mxu0 0
    %314 = vmatpush1.bf16.msra.mxu0 %v272
    %315 = vmatprep.subr.bf16.mxu0 0
    %316 = vmatpush1.bf16.msra.mxu0 %v273
    %317 = vmatprep.subr.bf16.mxu0 0
    %318 = vmatpush1.bf16.msra.mxu0 %v274
    %319 = vmatprep.subr.bf16.mxu0 0
    %320 = vmatpush1.bf16.msra.mxu0 %v275
    %321 = vmatprep.subr.bf16.mxu0 0
    %322 = vmatpush1.bf16.msra.mxu0 %v276
    %323 = vmatprep.subr.bf16.mxu0 0
    %324 = vmatpush1.bf16.msra.mxu0 %v277
    %325 = vmatprep.subr.bf16.mxu0 0
    %326 = vmatpush1.bf16.msra.mxu0 %v278
    %327 = vmatprep.mubr.bf16.mxu0 %v160
    %328 = vmatmul.mubr.bf16.gmra.mrb[0].mxu0 %v159
    %v329 = vpop.f32.mrb[0].mxu0
    %v330 = vadd.f32 %v198, %v329
    %v331 = vpop.f32.mrb[0].mxu0
    %v332 = vpop.f32.mrb[0].mxu0
    %v333 = vpop.f32.mrb[0].mxu0
    %334 = vdwg.mxu0
    %335 = vst [vmem:[#allocation7] sm:$0x3] %v330
    // Predicated region
    $region22: #{model_forward.1} parent=1 // pred_check
      _
    $region23: #{model_forward.1} parent=1 // pred_check_branch
      %337 = sbr.rel (0) target = $region25
    $region24: #{model_forward.1} parent=1 // pred_region
      %s339 = ssub.s32 32, 32
      %340 = vsyncadd [#allocation4], %s339
      %s342 = sshll.u32 [#allocation7], 4
      %s343 = int_to_ptr.vmem [resolvable:$true] %s342
      %345 = dma.vmem_to_hbm [thread:$0]  %s343, 32, %s3, [#allocation4]
    $region25: #{model_forward.1} parent=1 // pred_fallthru
      _
    // Predicated region
    $region26: #{model_forward.1} parent=1 // pred_check
      _
    $region27: #{model_forward.1} parent=1 // pred_check_branch
      %347 = sbr.rel (0) target = $region29
    $region28: #{model_forward.1} parent=1 // pred_region
      %348 = dma.done [#allocation4], 32
    $region29: #{model_forward.1} parent=1 // pred_fallthru
      _
    %349 = vsyncpa [#allocation3], 1
    %350 = vsyncpa [#allocation6], 1
    %351 = vsyncpa [#allocation4], 1

</llo_original>
